<compile_context>
chip_gen: v7x
topology: tpu7x:2x2x1
jax: 0.10.0
libtpu: 0.0.40
codegen_flags: <defaults>
</compile_context>

<pallas_src>
import jax
import jax.numpy as jnp
from jax.experimental import pallas as pl
from jax.experimental.pallas import tpu as pltpu

# ----------------------------------------------------------------------------
# Constants from the PyTorch module __init__
# ----------------------------------------------------------------------------
W_HIDDEN = jnp.array(
    [[-0.791636392274, 0.405410650556], [2.10403757171, -1.817878593885],
     [0.05550036152, 2.794980642297], [0.144256943918, -0.994731363003],
     [2.266245472703, -1.708296224438], [1.89629036566, 1.710785134293],
     [0.16659768085, 1.137834783101], [-0.200003130639, -0.318788021016],
     [2.097059284415, 1.884763678425], [-1.957432365036, -0.073871941684],
     [-1.555312333591, 0.059218632455], [-0.182528434323, -1.891391398822],
     [-0.029359672863, -0.110670390187], [1.068817713914, 0.007719234695],
     [0.381601690513, 0.658322241235], [1.387332987922, 0.920062523632],
     [0.052434142832, -1.232722510619], [0.392710825626, 1.474891543585],
     [0.038110089712, -0.799215386015], [-2.074021465439, 0.104573034195]],
    dtype=jnp.float32)  # (20, 2)  -- nn.Linear stores (out, in)

W_OUTPUT = jnp.array(
    [[-0.225601187717, -1.273670107566, 0.527405768474, -0.476809749441,
      1.280144720456, -1.766647941691, 1.542681844839, -1.18140559844,
      1.227534443335, -1.652318673178, 0.578430515632, 2.158010829121,
      -0.66451643497, 1.072369935945, 0.512433028906, 0.312958846522,
      1.589953403409, -1.236633262437, -1.180208819396, 2.021434197206]],
    dtype=jnp.float32)  # (1, 20)

B_HIDDEN = jnp.array(
    [0.860345365133, -1.862383963561, 1.183216285688, 0.555739674189,
     1.461160134132, -3.408190429734, -1.599040868163, 0.255319786598,
     -0.182093264211, 2.408751516229, -0.623591098159, -0.331333584479,
     -1.327780994325, -1.187648291875, -0.970405217782, -0.443909583168,
     -1.805230662087, 1.537074706816, 1.122540156639, -0.38947230395],
    dtype=jnp.float32)  # (20,)

B_OUTPUT = jnp.array([0.0], dtype=jnp.float32)  # (1,)

IN_FEATURES = 2
HIDDEN = 20
OUT_FEATURES = 1

# Lane tile over the batch axis (multiple of 128).  Keeps the (20, TB) hidden
# activations within comfortable vreg/VMEM budget on every generation (v7x
# included) while amortizing the ~0.35 us per-grid-step overhead.
TB_DEFAULT = 1024


# ----------------------------------------------------------------------------
# Pallas kernel: fully fused forward pass on the VPU/EUP (no MXU needed)
# ----------------------------------------------------------------------------
def _mlp_kernel(x_ref, w1_ref, b1_ref, w2t_ref, b2_ref, o_ref):
    x = x_ref[...]                     # (2, TB)   batch on lanes
    w1 = w1_ref[...]                   # (20, 2)
    b1 = b1_ref[...]                   # (20, 1)
    w2t = w2t_ref[...]                 # (20, 1)

    x0 = x[0:1, :]                     # (1, TB)
    x1 = x[1:2, :]                     # (1, TB)

    # Layer 1: 40 scalar-broadcast FMAs on the VPU -> (20, TB)
    h = w1[:, 0:1] * x0 + w1[:, 1:2] * x1 + b1
    h = jax.nn.sigmoid(h)              # EUP transcendentals

    # Layer 2: 20 FMAs + sublane reduction (XLU) -> lane-dense (1, TB)
    o = jnp.sum(w2t * h, axis=0, keepdims=True) + b2_ref[...]
    o_ref[...] = o


def net_pde_forward(x, tb=TB_DEFAULT):
    """x: (N, 2) float array. Returns (N, 1) float32, matching Net_PDE.forward."""
    x = jnp.asarray(x, jnp.float32)
    n = x.shape[0]

    # Batch tile on the lane axis: multiple of 128, no larger than needed.
    n_128 = max(128, ((n + 127) // 128) * 128)
    tb = min(tb, n_128)
    n_pad = pl.cdiv(n, tb) * tb
    num_blocks = n_pad // tb

    # Transposed, lane-padded input: (2, N_pad).  Only 8 B/sample of padding work.
    x_t = jnp.zeros((IN_FEATURES, n_pad), jnp.float32).at[:, :n].set(x.T)

    # Tiny parameter tensors (stay VMEM-resident across the whole grid).
    w1 = W_HIDDEN                      # (20, 2)
    b1 = B_HIDDEN.reshape(HIDDEN, 1)   # (20, 1)
    w2t = W_OUTPUT.T                   # (20, 1)
    b2 = B_OUTPUT.reshape(1, 1)        # (1, 1)

    const_spec = lambda shape: pl.BlockSpec(shape, lambda i: (0, 0))

    out_p = pl.pallas_call(
        _mlp_kernel,
        out_shape=jax.ShapeDtypeStruct((OUT_FEATURES, n_pad), jnp.float32),
        grid=(num_blocks,),
        in_specs=[
            pl.BlockSpec((IN_FEATURES, tb), lambda i: (0, i)),   # x tile
            const_spec((HIDDEN, IN_FEATURES)),                   # w1
            const_spec((HIDDEN, 1)),                             # b1
            const_spec((HIDDEN, 1)),                             # w2^T
            const_spec((1, 1)),                                  # b2
        ],
        out_specs=pl.BlockSpec((OUT_FEATURES, tb), lambda i: (0, i)),
        compiler_params=pltpu.CompilerParams(
            dimension_semantics=("parallel",)),
    )(x_t, w1, b1, w2t, b2)

    return out_p[0, :n].reshape(n, OUT_FEATURES)


def net_pde_reference(x):
    """Pure-JAX reference mirroring the PyTorch forward."""
    x = jnp.asarray(x, jnp.float32)
    h = jax.nn.sigmoid(x @ W_HIDDEN.T + B_HIDDEN)
    return h @ W_OUTPUT.T + B_OUTPUT


if __name__ == "__main__":
    key = jax.random.PRNGKey(0)
    x = jax.random.normal(key, (8, 2), dtype=jnp.float32)  # batch=8, inputNum=2

    out = net_pde_forward(x)
    out = jax.block_until_ready(out)

    ref = net_pde_reference(x)
    assert out.shape == (8, 1), out.shape
    assert jnp.allclose(out, ref, atol=1e-5, rtol=1e-5), (out, ref)

    print("KERNEL_OK")
</pallas_src>

<mosaic_0001>
module attributes {stable_mosaic.version = 11 : i64} {
  func.func @_mlp_kernel(%arg0: i32, %arg1: memref<2x128xf32, #tpu.memory_space<vmem>>, %arg2: memref<20x2xf32, #tpu.memory_space<vmem>>, %arg3: memref<20x1xf32, #tpu.memory_space<vmem>>, %arg4: memref<20x1xf32, #tpu.memory_space<vmem>>, %arg5: memref<1x1xf32, #tpu.memory_space<vmem>>, %arg6: memref<1x128xf32, #tpu.memory_space<vmem>>) attributes {dimension_semantics = [#tpu.dimension_semantics<parallel>], iteration_bounds = array<i64: 1>, scalar_prefetch = 0 : i64, scratch_operands = 0 : i64, tpu.core_type = #tpu.core_type<tc>, window_params = [{transform_indices = @transform_0, window_bounds = array<i64: 2, 128>}, {pipeline_mode = #tpu.pipeline_mode<synchronous>, transform_indices = @transform_1, window_bounds = array<i64: 20, 2>}, {pipeline_mode = #tpu.pipeline_mode<synchronous>, transform_indices = @transform_2, window_bounds = array<i64: 20, 1>}, {pipeline_mode = #tpu.pipeline_mode<synchronous>, transform_indices = @transform_3, window_bounds = array<i64: 20, 1>}, {pipeline_mode = #tpu.pipeline_mode<synchronous>, transform_indices = @transform_4, window_bounds = array<i64: 1, 1>}, {transform_indices = @transform_5, window_bounds = array<i64: 1, 128>}]} {
    %c0 = arith.constant 0 : index
    %c0_0 = arith.constant 0 : index
    %0 = vector.load %arg1[%c0, %c0_0] : memref<2x128xf32, #tpu.memory_space<vmem>>, vector<2x128xf32>
    %c0_1 = arith.constant 0 : index
    %c0_2 = arith.constant 0 : index
    %1 = vector.load %arg2[%c0_1, %c0_2] : memref<20x2xf32, #tpu.memory_space<vmem>>, vector<20x2xf32>
    %c0_3 = arith.constant 0 : index
    %c0_4 = arith.constant 0 : index
    %2 = vector.load %arg3[%c0_3, %c0_4] : memref<20x1xf32, #tpu.memory_space<vmem>>, vector<20x1xf32>
    %c0_5 = arith.constant 0 : index
    %c0_6 = arith.constant 0 : index
    %3 = vector.load %arg4[%c0_5, %c0_6] : memref<20x1xf32, #tpu.memory_space<vmem>>, vector<20x1xf32>
    %4 = vector.extract_strided_slice %0 {offsets = [0, 0], sizes = [1, 128], strides = [1, 1]} : vector<2x128xf32> to vector<1x128xf32>
    %5 = vector.extract_strided_slice %0 {offsets = [1, 0], sizes = [1, 128], strides = [1, 1]} : vector<2x128xf32> to vector<1x128xf32>
    %6 = vector.extract_strided_slice %1 {offsets = [0, 0], sizes = [20, 1], strides = [1, 1]} : vector<20x2xf32> to vector<20x1xf32>
    %7 = vector.broadcast %6 : vector<20x1xf32> to vector<20x128xf32>
    %8 = vector.broadcast %4 : vector<1x128xf32> to vector<20x128xf32>
    %9 = arith.mulf %7, %8 : vector<20x128xf32>
    %10 = vector.extract_strided_slice %1 {offsets = [0, 1], sizes = [20, 1], strides = [1, 1]} : vector<20x2xf32> to vector<20x1xf32>
    %11 = vector.broadcast %10 : vector<20x1xf32> to vector<20x128xf32>
    %12 = vector.broadcast %5 : vector<1x128xf32> to vector<20x128xf32>
    %13 = arith.mulf %11, %12 : vector<20x128xf32>
    %14 = arith.addf %9, %13 : vector<20x128xf32>
    %15 = vector.broadcast %2 : vector<20x1xf32> to vector<20x128xf32>
    %16 = arith.addf %14, %15 : vector<20x128xf32>
    %17 = arith.negf %16 : vector<20x128xf32>
    %18 = math.exp %17 : vector<20x128xf32>
    %cst = arith.constant 1.000000e+00 : f32
    %19 = vector.broadcast %cst : f32 to vector<20x128xf32>
    %20 = arith.addf %19, %18 : vector<20x128xf32>
    %21 = arith.divf %19, %20 : vector<20x128xf32>
    %22 = vector.broadcast %3 : vector<20x1xf32> to vector<20x128xf32>
    %23 = arith.mulf %22, %21 : vector<20x128xf32>
    %cst_7 = arith.constant dense<0.000000e+00> : vector<128xf32>
    %24 = vector.multi_reduction <add>, %23, %cst_7 [0] : vector<20x128xf32> to vector<128xf32>
    %25 = vector.shape_cast %24 : vector<128xf32> to vector<1x128xf32>
    %c0_8 = arith.constant 0 : index
    %c0_9 = arith.constant 0 : index
    %26 = vector.load %arg5[%c0_8, %c0_9] : memref<1x1xf32, #tpu.memory_space<vmem>>, vector<1x1xf32>
    %27 = vector.broadcast %26 : vector<1x1xf32> to vector<1x128xf32>
    %28 = arith.addf %25, %27 : vector<1x128xf32>
    %c0_10 = arith.constant 0 : index
    %c0_11 = arith.constant 0 : index
    %29 = vector.load %arg6[%c0_10, %c0_11] : memref<1x128xf32, #tpu.memory_space<vmem>>, vector<1x128xf32>
    tpu.vector_store %arg6[%c0_10, %c0_11], %28 {strides = array<i32>} : memref<1x128xf32, #tpu.memory_space<vmem>>, vector<1x128xf32>,
    return
  }
  func.func @transform_0(%arg0: i32) -> (i32, i32) {
    %c0_i32 = arith.constant 0 : i32
    %c0_i32_0 = arith.constant 0 : i32
    return %c0_i32, %arg0 : i32, i32
  }
  func.func @transform_1(%arg0: i32) -> (i32, i32) {
    %c0_i32 = arith.constant 0 : i32
    %c0_i32_0 = arith.constant 0 : i32
    %c0_i32_1 = arith.constant 0 : i32
    return %c0_i32, %c0_i32_0 : i32, i32
  }
  func.func @transform_2(%arg0: i32) -> (i32, i32) {
    %c0_i32 = arith.constant 0 : i32
    %c0_i32_0 = arith.constant 0 : i32
    %c0_i32_1 = arith.constant 0 : i32
    return %c0_i32, %c0_i32_0 : i32, i32
  }
  func.func @transform_3(%arg0: i32) -> (i32, i32) {
    %c0_i32 = arith.constant 0 : i32
    %c0_i32_0 = arith.constant 0 : i32
    %c0_i32_1 = arith.constant 0 : i32
    return %c0_i32, %c0_i32_0 : i32, i32
  }
  func.func @transform_4(%arg0: i32) -> (i32, i32) {
    %c0_i32 = arith.constant 0 : i32
    %c0_i32_0 = arith.constant 0 : i32
    %c0_i32_1 = arith.constant 0 : i32
    return %c0_i32, %c0_i32_0 : i32, i32
  }
  func.func @transform_5(%arg0: i32) -> (i32, i32) {
    %c0_i32 = arith.constant 0 : i32
    %c0_i32_0 = arith.constant 0 : i32
    return %c0_i32, %arg0 : i32, i32
  }
}

</mosaic_0001>

<llo_original>
// kernel: tpu_custom_call.1
$region0: #{tpu_custom_call.1}
  #allocation0 [shape = 'u32[]', space=smem, size = 0x4, offset = 0x4, fixed_abs, tag = 'smem constant byte address 0x4 - core index']
  #allocation1 [shape = 'u32[144,128]{1,0:T(1,128)}', space=vmem, size = 0x12000, scoped, tag = 'internal scratch']
  #allocation2 [shape = 'f32[1,1]{1,0:T(1,128)S(1)}', space=vmem, size = 0x200, scoped, tag = 'scoped memory for tpu_custom_call.1']
  %s0 = inlined_call_operand.vmem [shape: f32[2,128], index: 0, kind: input, shape index: {}]
  %s1 = inlined_call_operand.vmem [shape: f32[20,2], index: 1, kind: input, shape index: {}]
  %s2 = inlined_call_operand.vmem [shape: f32[20,1], index: 2, kind: input, shape index: {}]
  %s3 = inlined_call_operand.vmem [shape: f32[20,1], index: 3, kind: input, shape index: {}]
  %s4 = inlined_call_operand.<no memory space> [shape: f32[1,1], index: 4, kind: input, shape index: {}]
  %s5 = inlined_call_operand.hbm [shape: f32[1,128], index: 5, kind: output, shape index: {}]
  %s6 = sld [smem:[#allocation0]]
  $region30: #{tpu_custom_call.1} parent=0
    _
  %s8 = ssub.s32 1, %s6
  %s9 = scalar_select 0, %s8, %s6
  %v10 = vstv %s4
  %11 = vst [vmem:[#allocation2] sm:$0x1] %v10
  $region1: #{tpu_custom_call.1} parent=0
    #allocation3 [shape = 'u8[512]{0}', space=vmem, size = 0x400, scoped, tag = 'output window, operand 0, single buffered']
    #allocation4 [shape = 's32[1]{0}', space=sflag, size = 0x4, scoped, tag = 'scoped memory for tpu_custom_call.1']
    %12 = vsyncpa [#allocation4], 0
    // Predicated region
    $region2: #{tpu_custom_call.1} parent=1 // pred_check
      _
    $region3: #{tpu_custom_call.1} parent=1 // pred_check_branch
      %14 = sbr.rel (0) target = $region5
    $region4: #{tpu_custom_call.1} parent=1 // pred_region
      _
    $region5: #{tpu_custom_call.1} parent=1 // pred_fallthru
      _
    // Predicated region
    $region6: #{tpu_custom_call.1} parent=1 // pred_check
      _
    $region7: #{tpu_custom_call.1} parent=1 // pred_check_branch
      %16 = sbr.rel (0) target = $region9
    $region8: #{tpu_custom_call.1} parent=1 // pred_region
      _
    $region9: #{tpu_custom_call.1} parent=1 // pred_fallthru
      _
    // Predicated region
    $region10: #{tpu_custom_call.1} parent=1 // pred_check
      _
    $region11: #{tpu_custom_call.1} parent=1 // pred_check_branch
      %18 = sbr.rel (0) target = $region13
    $region12: #{tpu_custom_call.1} parent=1 // pred_region
      _
    $region13: #{tpu_custom_call.1} parent=1 // pred_fallthru
      _
    // Predicated region
    $region14: #{tpu_custom_call.1} parent=1 // pred_check
      _
    $region15: #{tpu_custom_call.1} parent=1 // pred_check_branch
      %20 = sbr.rel (0) target = $region17
    $region16: #{tpu_custom_call.1} parent=1 // pred_region
      _
    $region17: #{tpu_custom_call.1} parent=1 // pred_fallthru
      _
    // Predicated region
    $region18: #{tpu_custom_call.1} parent=1 // pred_check
      _
    $region19: #{tpu_custom_call.1} parent=1 // pred_check_branch
      %22 = sbr.rel (0) target = $region21
    $region20: #{tpu_custom_call.1} parent=1 // pred_region
      _
    $region21: #{tpu_custom_call.1} parent=1 // pred_fallthru
      _
    %v23 = vld [vmem:[%s0] sm:$0x3]
    %v24 = vld [vmem:[%s1] sm:$0xff]
    %v25 = vld [vmem:[%s1 + $0x8] sm:$0xff]
    %v26 = vld [vmem:[%s1 + $0x10] sm:$0xf]
    %v27 = vld [vmem:[%s2] sm:$0xff]
    %v28 = vld [vmem:[%s2 + $0x8] sm:$0xff]
    %v29 = vld [vmem:[%s2 + $0x10] sm:$0xf]
    %v30 = vld [vmem:[%s3] sm:$0xff]
    %v31 = vld [vmem:[%s3 + $0x8] sm:$0xff]
    %v32 = vld [vmem:[%s3 + $0x10] sm:$0xf]
    %34 = vset.pattern.permute.xlu0 0
    %35 = vperm.xlu0 %34, %v24
    %v36 = vpop.permute.xlu0 %35
    %39 = vset.pattern.permute.xlu0 0
    %40 = vperm.xlu0 %39, %v25
    %v41 = vpop.permute.xlu0 %40
    %44 = vset.pattern.permute.xlu0 0
    %45 = vperm.xlu0 %44, %v26
    %v46 = vpop.permute.xlu0 %45
    %v48 = vlaneseq
    %v49 = vshrl.u32 %v48, 7
    %v50 = vsub.s32 0, %v49
    %v51 = vrot.slane %v23, %v50
    %v52 = vmul.f32 %v36, %v51
    %v53 = vmul.f32 %v41, %v51
    %v54 = vmul.f32 %v46, %v51
    %55 = vset.pattern.permute.xlu0 1
    %56 = vperm.xlu0 %55, %v24
    %v57 = vpop.permute.xlu0 %56
    %59 = vset.pattern.permute.xlu0 1
    %60 = vperm.xlu0 %59, %v25
    %v61 = vpop.permute.xlu0 %60
    %63 = vset.pattern.permute.xlu0 1
    %64 = vperm.xlu0 %63, %v26
    %v65 = vpop.permute.xlu0 %64
    %v67 = vlaneseq
    %v68 = vshrl.u32 %v67, 7
    %v69 = vsub.s32 1, %v68
    %v70 = vrot.slane %v23, %v69
    %v71 = vmul.f32 %v57, %v70
    %v72 = vmul.f32 %v61, %v70
    %v73 = vmul.f32 %v65, %v70
    %v74 = vadd.f32 %v52, %v71
    %v75 = vadd.f32 %v53, %v72
    %v76 = vadd.f32 %v54, %v73
    %78 = vset.pattern.permute.xlu0 0
    %79 = vperm.xlu0 %78, %v27
    %v80 = vpop.permute.xlu0 %79
    %83 = vset.pattern.permute.xlu0 0
    %84 = vperm.xlu0 %83, %v28
    %v85 = vpop.permute.xlu0 %84
    %88 = vset.pattern.permute.xlu0 0
    %89 = vperm.xlu0 %88, %v29
    %v90 = vpop.permute.xlu0 %89
    %v92 = vadd.f32 %v74, %v80
    %v93 = vadd.f32 %v75, %v85
    %v94 = vadd.f32 %v76, %v90
    %v95 = vxor.u32 %v92, 2147483648
    %v96 = vxor.u32 %v93, 2147483648
    %v97 = vxor.u32 %v94, 2147483648
    %v98 = vmul.f32 %v95, 1.442695
    %v99 = vpow.pop %v98
    %v100 = vmul.f32 %v96, 1.442695
    %v101 = vpow.pop %v100
    %v102 = vmul.f32 %v97, 1.442695
    %v103 = vpow.pop %v102
    %v104 = vadd.f32 %v99, 1.0
    %v105 = vadd.f32 %v101, 1.0
    %v106 = vadd.f32 %v103, 1.0
    %v107 = vrcp.pop %v104
    %v108 = vmul.f32 1.0, %v107
    %v109 = vrcp.pop %v105
    %v110 = vmul.f32 1.0, %v109
    %v111 = vrcp.pop %v106
    %v112 = vmul.f32 1.0, %v111
    %114 = vset.pattern.permute.xlu0 0
    %115 = vperm.xlu0 %114, %v30
    %v116 = vpop.permute.xlu0 %115
    %119 = vset.pattern.permute.xlu0 0
    %120 = vperm.xlu0 %119, %v31
    %v121 = vpop.permute.xlu0 %120
    %124 = vset.pattern.permute.xlu0 0
    %125 = vperm.xlu0 %124, %v32
    %v126 = vpop.permute.xlu0 %125
    %v128 = vmul.f32 %v116, %v108
    %v129 = vmul.f32 %v121, %v110
    %v130 = vmul.f32 %v126, %v112
    %v131 = vadd.f32 %v128, %v129
    %vm132 = vcmask 1043456
    %v133 = vsel %vm132, %v130, 0.0
    %v134 = vadd.f32 %v131, %v133
    %v135 = vrot.slane %v134, 4
    %v136 = vadd.f32 %v134, %v135
    %v137 = vrot.slane %v136, 2
    %v138 = vadd.f32 %v136, %v137
    %v139 = vrot.slane %v138, 1
    %v140 = vadd.f32 %v138, %v139
    %v141 = vld [vmem:[#allocation2] sm:$0x1]
    %143 = vset.pattern.permute.xlu0 0
    %144 = vperm.xlu0 %143, %v141
    %v145 = vpop.permute.xlu0 %144
    %v147 = vlaneseq
    %v148 = vshrl.u32 %v147, 7
    %v149 = vsub.s32 0, %v148
    %v150 = vrot.slane %v145, %v149
    %v151 = vadd.f32 %v140, %v150
    %152 = vst [vmem:[#allocation3] sm:$0x1] %v151
    // Predicated region
    $region22: #{tpu_custom_call.1} parent=1 // pred_check
      _
    $region23: #{tpu_custom_call.1} parent=1 // pred_check_branch
      %154 = sbr.rel (0) target = $region25
    $region24: #{tpu_custom_call.1} parent=1 // pred_region
      %s156 = ssub.s32 16, 16
      %157 = vsyncadd [#allocation4], %s156
      %s159 = sshll.u32 [#allocation3], 4
      %s160 = int_to_ptr.vmem [resolvable:$true] %s159
      %162 = dma.vmem_to_hbm [thread:$0]  %s160, 16, %s5, [#allocation4]
    $region25: #{tpu_custom_call.1} parent=1 // pred_fallthru
      _
    // Predicated region
    $region26: #{tpu_custom_call.1} parent=1 // pred_check
      _
    $region27: #{tpu_custom_call.1} parent=1 // pred_check_branch
      %164 = sbr.rel (0) target = $region29
    $region28: #{tpu_custom_call.1} parent=1 // pred_region
      %165 = dma.done [#allocation4], 16
    $region29: #{tpu_custom_call.1} parent=1 // pred_fallthru
      _
    %166 = vsyncpa [#allocation4], 1

</llo_original>
